<compile_context>
chip_gen: v6e
topology: v6e:2x2x1
jax: 0.10.0
libtpu: 0.0.40
codegen_flags: <defaults>
</compile_context>

<pallas_src>
import jax
import jax.numpy as jnp
import numpy as np
from jax.experimental import pallas as pl
from jax.experimental.pallas import tpu as pltpu


def _round_up(v, m):
    return ((v + m - 1) // m) * m


def _make_se_kernel(BT, C, H, W, MIP, CR, offs, shapes):
    HW, L = H * W, H + W

    def kernel(x_ref, poolT_ref, pool_ref, prm_ref, o_ref):
        x3 = x_ref[...]                                 # (BT, C, HW), storage dtype
        poolT = poolT_ref[...]                          # (HW, L),  x dtype
        pool = pool_ref[...]                            # (L, HW),  f32
        prm = prm_ref[...]                              # (R, Wp),  f32 packed params

        def piece(name):
            off = offs[name]
            h, w = shapes[name]
            return prm[off:off + h, :w]

        w1, b1 = piece("w1"), piece("b1")               # (MIP, C), (MIP, 1)
        whw, bhw = piece("whw"), piece("bhw")           # (2, MIP), (2, 1)
        fc1wT, fc1b = piece("fc1wT"), piece("fc1b")     # (C, CR), (1, CR)
        fc2wT, fc2b = piece("fc2wT"), piece("fc2b")     # (CR, C), (1, C)

        # ---- directional average pools for the whole block: ONE lane-dense
        #      (BT*C, HW) @ (HW, H+W) MXU matmul, no per-batch loop -------------
        xflat = x3.reshape(BT * C, HW)
        xhw = jnp.dot(xflat, poolT,
                      preferred_element_type=jnp.float32)                   # (BT*C, L)
        xhw3 = xhw.reshape(BT, C, L)

        # ---- conv1 (+ folded BN) + h_swish on the concatenated pools ----------
        w1b = jnp.broadcast_to(w1[None], (BT, MIP, C))
        y = jnp.einsum("bmc,bcl->bml", w1b, xhw3,
                       preferred_element_type=jnp.float32) + b1[None]       # (BT, MIP, L)
        y = y * (jnp.clip(y + 3.0, 0.0, 6.0) * (1.0 / 6.0))                 # h_swish

        # ---- conv_h / conv_w (packed, one tiny batched matmul) + sigmoid ------
        whwb = jnp.broadcast_to(whw[None], (BT, 2, MIP))
        a = jnp.einsum("bom,bml->bol", whwb, y,
                       preferred_element_type=jnp.float32) + bhw[None]      # (BT, 2, L)
        a_h = jax.nn.sigmoid(a[:, 0:1, :H]).reshape(BT, H)                  # (BT, H)
        a_w = jax.nn.sigmoid(a[:, 1:2, H:]).reshape(BT, W)                  # (BT, W)

        # ---- fused CoordAtt-weighted global mean (squeeze):  the (BT,C,H,W)
        #      `coord` tensor is never materialized.  gh*gw = a_h*a_w/(H*W). ----
        gh = jnp.dot(a_h, pool[:H, :], preferred_element_type=jnp.float32)  # (BT, HW)
        gw = jnp.dot(a_w, pool[H:, :], preferred_element_type=jnp.float32)  # (BT, HW)
        g3 = (gh * gw).astype(x3.dtype).reshape(BT, 1, HW)
        s = jnp.einsum("bol,bcl->boc", g3, x3,
                       preferred_element_type=jnp.float32)                  # (BT, 1, C)
        s2 = s.reshape(BT, C)

        # ---- excitation: FC -> ReLU -> FC -> sigmoid --------------------------
        h1 = jnp.maximum(
            jnp.dot(s2, fc1wT, preferred_element_type=jnp.float32) + fc1b, 0.0)   # (BT, CR)
        z2 = jax.nn.sigmoid(
            jnp.dot(h1, fc2wT, preferred_element_type=jnp.float32) + fc2b)        # (BT, C)
        z3 = z2.reshape(BT, C, 1)

        # ---- single block-wide scale + lane-dense unmasked store --------------
        o_ref[...] = (x3 * z3.astype(x3.dtype)).astype(o_ref.dtype)

    return kernel


def _padded_bytes(shape, itemsize):
    lead = int(np.prod(shape[:-2])) if len(shape) > 2 else 1
    return lead * _round_up(shape[-2], 8) * _round_up(shape[-1], 128) * itemsize


def se_module_pallas(x, p, *, bn_eps=1e-5):
    B, C, H, W = x.shape
    HW, L = H * W, H + W
    x2 = x.reshape(B, C, HW)                 # lane-dense layout for the kernel
    f32 = jnp.float32
    MIP = p["conv1_w"].shape[0]
    CR = p["fc1_w"].shape[0]

    # ---- fold conv1 bias + BatchNorm (eval / running stats) into one affine ----
    scale = p["bn_gamma"][:, 0] * jax.lax.rsqrt(p["bn_var"][:, 0] + bn_eps)        # (MIP,)
    w1_eff = (p["conv1_w"] * scale[:, None]).astype(f32)                           # (MIP, C)
    b1_eff = ((p["conv1_b"][:, 0] - p["bn_mean"][:, 0]) * scale
              + p["bn_beta"][:, 0])[:, None].astype(f32)                           # (MIP, 1)

    whw = jnp.concatenate([p["convh_w"], p["convw_w"]], axis=0).astype(f32)        # (2, MIP)
    bhw = jnp.concatenate([p["convh_b"], p["convw_b"]], axis=0).astype(f32)        # (2, 1)

    # ---- pack every small weight/bias into ONE padded f32 slab -----------------
    pieces = [
        ("w1",    w1_eff),                         # (MIP, C)
        ("b1",    b1_eff),                         # (MIP, 1)
        ("whw",   whw),                            # (2, MIP)
        ("bhw",   bhw),                            # (2, 1)
        ("fc1wT", p["fc1_w"].T.astype(f32)),       # (C, CR)   pre-transposed
        ("fc1b",  p["fc1_b"].T.astype(f32)),       # (1, CR)   row-vector bias
        ("fc2wT", p["fc2_w"].T.astype(f32)),       # (CR, C)
        ("fc2b",  p["fc2_b"].T.astype(f32)),       # (1, C)
    ]
    width = max(a.shape[1] for _, a in pieces)
    blocks, offs, shapes, r = [], {}, {}, 0
    for name, a in pieces:
        h, w = a.shape
        hp = _round_up(h, 8)                       # keep every slice sublane-aligned
        blocks.append(jnp.pad(a, ((0, hp - h), (0, width - w))))
        offs[name], shapes[name] = r, (h, w)
        r += hp
    prm = jnp.concatenate(blocks, axis=0)          # (R, width) f32

    # ---- directional average-pooling matrix (constant), both orientations ------
    # pool[h, l]   = [l//W == h]/W   (rows 0..H-1)   -> mean over width
    # pool[H+w, l] = [l%W  == w]/H   (rows H..H+W-1) -> mean over height
    l_idx = np.arange(HW)
    pht = (l_idx[None, :] // W == np.arange(H)[:, None]).astype(np.float32) / np.float32(W)
    pwt = (l_idx[None, :] % W == np.arange(W)[:, None]).astype(np.float32) / np.float32(H)
    pool_np = np.concatenate([pht, pwt], axis=0)                                   # (L, HW)
    pool = jnp.asarray(pool_np, f32)                                               # gh/gw expansion
    poolT = jnp.asarray(pool_np.T, x.dtype)                                        # (HW, L) plain dot

    # ---- batch tile: sized by bytes (~2 MiB block), but with >=2 grid steps ----
    # whenever B >= 2 so the "parallel" axis can shard across both v7x TCs.
    itemsize = x.dtype.itemsize
    per_batch_bytes = C * HW * itemsize
    target_bytes = 2 << 20
    divisors = [d for d in range(1, B + 1) if B % d == 0]
    cands = [d for d in divisors
             if d * per_batch_bytes <= target_bytes and (B // d >= 2 or B == 1)]
    bt = max(cands) if cands else 1
    grid = (B // bt,)

    # ---- explicit VMEM budget (double-buffered in/out blocks + padded params) --
    block_bytes = bt * _round_up(C, 8) * _round_up(HW, 128) * itemsize
    param_bytes = sum(_padded_bytes(a.shape, a.dtype.itemsize)
                      for a in (poolT, pool, prm))
    vmem_need = 4 * block_bytes + 2 * param_bytes + (8 << 20)
    vmem_limit = int(min(max(vmem_need, 16 << 20), 48 << 20))  # safe on v7x's 64 MiB

    # ---- advisory cost model: memory-bound custom call --------------------------
    cost = pl.CostEstimate(
        flops=int(2 * B * C * HW * (L + 1) + B * C * HW),
        transcendentals=int(B * (H + W + C)),
        bytes_accessed=int(2 * B * C * HW * itemsize + 2 * param_bytes),
    )

    kernel = _make_se_kernel(bt, C, H, W, MIP, CR, offs, shapes)

    in_specs = [
        pl.BlockSpec((bt, C, HW), lambda i: (i, 0, 0)),        # x block
        pl.BlockSpec(poolT.shape, lambda i: (0, 0)),           # pooling matrix (HW, L)
        pl.BlockSpec(pool.shape, lambda i: (0, 0)),            # pooling matrix (L, HW)
        pl.BlockSpec(prm.shape, lambda i: (0, 0)),             # packed small params
    ]
    out_spec = pl.BlockSpec((bt, C, HW), lambda i: (i, 0, 0))

    out2 = pl.pallas_call(
        kernel,
        out_shape=jax.ShapeDtypeStruct((B, C, HW), x.dtype),
        grid_spec=pltpu.PrefetchScalarGridSpec(
            num_scalar_prefetch=0,
            grid=grid,
            in_specs=in_specs,
            out_specs=out_spec,
        ),
        compiler_params=pltpu.CompilerParams(
            dimension_semantics=("parallel",),
            vmem_limit_bytes=vmem_limit,
        ),
        cost_estimate=cost,
    )(x2, poolT, pool, prm)

    return out2.reshape(B, C, H, W)


def se_module_ref(x, p):
    """Pure-JAX reference (mirrors the PyTorch SE_Module forward, eval-mode BN)."""
    xf = x.astype(jnp.float32)
    B, C, H, W = x.shape
    eps = 1e-5

    x_h = jnp.mean(xf, axis=3)                          # (B, C, H)
    x_w = jnp.mean(xf, axis=2)                          # (B, C, W)
    y = jnp.concatenate([x_h, x_w], axis=2)             # (B, C, H+W)
    y = jnp.einsum("mc,bcl->bml", p["conv1_w"], y) + p["conv1_b"][None]
    y = (y - p["bn_mean"][None]) * (p["bn_gamma"][None]
         * jax.lax.rsqrt(p["bn_var"][None] + eps)) + p["bn_beta"][None]
    y = y * (jnp.clip(y + 3.0, 0.0, 6.0) / 6.0)
    yh, yw = y[:, :, :H], y[:, :, H:]
    a_h = jax.nn.sigmoid(jnp.einsum("om,bml->bol", p["convh_w"], yh) + p["convh_b"][None])
    a_w = jax.nn.sigmoid(jnp.einsum("om,bml->bol", p["convw_w"], yw) + p["convw_b"][None])
    coord = xf * a_w[:, :, None, :] * a_h[:, :, :, None]

    s = jnp.mean(coord, axis=(2, 3))                    # (B, C)
    h1 = jnp.maximum(s @ p["fc1_w"].T + p["fc1_b"][:, 0], 0.0)
    z = jax.nn.sigmoid(h1 @ p["fc2_w"].T + p["fc2_b"][:, 0])
    return xf * z[:, :, None, None]


if __name__ == "__main__":
    B, C, H, W = 2, 32, 16, 16
    RATIO = 16
    CR = C // RATIO                 # 2
    MIP = max(8, C // 32)           # 8 (CoordAtt reduction=32)

    keys = jax.random.split(jax.random.PRNGKey(0), 16)
    x = jax.random.normal(keys[0], (B, C, H, W), jnp.float32)

    # Deterministic synthetic parameters (shapes from SE_Module.__init__).
    p = {
        "conv1_w": 0.3 * jax.random.normal(keys[1], (MIP, C), jnp.float32),
        "conv1_b": 0.1 * jax.random.normal(keys[2], (MIP, 1), jnp.float32),
        "bn_gamma": 0.5 + jax.random.uniform(keys[3], (MIP, 1), jnp.float32),
        "bn_beta": 0.1 * jax.random.normal(keys[4], (MIP, 1), jnp.float32),
        "bn_mean": 0.1 * jax.random.normal(keys[5], (MIP, 1), jnp.float32),
        "bn_var": 0.5 + jax.random.uniform(keys[6], (MIP, 1), jnp.float32),
        "convh_w": 0.3 * jax.random.normal(keys[7], (1, MIP), jnp.float32),
        "convh_b": 0.1 * jax.random.normal(keys[8], (1, 1), jnp.float32),
        "convw_w": 0.3 * jax.random.normal(keys[9], (1, MIP), jnp.float32),
        "convw_b": 0.1 * jax.random.normal(keys[10], (1, 1), jnp.float32),
        "fc1_w": 0.3 * jax.random.normal(keys[11], (CR, C), jnp.float32),
        "fc1_b": 0.1 * jax.random.normal(keys[12], (CR, 1), jnp.float32),
        "fc2_w": 0.3 * jax.random.normal(keys[13], (C, CR), jnp.float32),
        "fc2_b": 0.1 * jax.random.normal(keys[14], (C, 1), jnp.float32),
    }

    out = jax.block_until_ready(se_module_pallas(x, p))
    ref = jax.block_until_ready(se_module_ref(x, p))
    assert out.shape == x.shape and out.dtype == x.dtype
    np.testing.assert_allclose(np.asarray(out), np.asarray(ref), rtol=1e-3, atol=1e-3)
    print("KERNEL_OK")
</pallas_src>

<mosaic_0001>
module attributes {stable_mosaic.version = 11 : i64} {
  func.func @kernel(%arg0: i32, %arg1: memref<1x32x256xf32, #tpu.memory_space<vmem>>, %arg2: memref<256x32xf32, #tpu.memory_space<vmem>>, %arg3: memref<32x256xf32, #tpu.memory_space<vmem>>, %arg4: memref<88x32xf32, #tpu.memory_space<vmem>>, %arg5: memref<1x32x256xf32, #tpu.memory_space<vmem>>) attributes {dimension_semantics = [#tpu.dimension_semantics<parallel>], iteration_bounds = array<i64: 2>, scalar_prefetch = 0 : i64, scratch_operands = 0 : i64, tpu.core_type = #tpu.core_type<tc>, window_params = [{transform_indices = @transform_0, window_bounds = array<i64: 1, 32, 256>}, {pipeline_mode = #tpu.pipeline_mode<synchronous>, transform_indices = @transform_1, window_bounds = array<i64: 256, 32>}, {pipeline_mode = #tpu.pipeline_mode<synchronous>, transform_indices = @transform_2, window_bounds = array<i64: 32, 256>}, {pipeline_mode = #tpu.pipeline_mode<synchronous>, transform_indices = @transform_3, window_bounds = array<i64: 88, 32>}, {transform_indices = @transform_4, window_bounds = array<i64: 1, 32, 256>}]} {
    %c0 = arith.constant 0 : index
    %c0_0 = arith.constant 0 : index
    %c0_1 = arith.constant 0 : index
    %0 = vector.load %arg1[%c0, %c0_0, %c0_1] : memref<1x32x256xf32, #tpu.memory_space<vmem>>, vector<1x32x256xf32>
    %c0_2 = arith.constant 0 : index
    %c0_3 = arith.constant 0 : index
    %1 = vector.load %arg2[%c0_2, %c0_3] : memref<256x32xf32, #tpu.memory_space<vmem>>, vector<256x32xf32>
    %c0_4 = arith.constant 0 : index
    %c0_5 = arith.constant 0 : index
    %2 = vector.load %arg3[%c0_4, %c0_5] : memref<32x256xf32, #tpu.memory_space<vmem>>, vector<32x256xf32>
    %c0_6 = arith.constant 0 : index
    %c0_7 = arith.constant 0 : index
    %3 = vector.load %arg4[%c0_6, %c0_7] : memref<88x32xf32, #tpu.memory_space<vmem>>, vector<88x32xf32>
    %4 = vector.extract_strided_slice %3 {offsets = [0, 0], sizes = [8, 32], strides = [1, 1]} : vector<88x32xf32> to vector<8x32xf32>
    %5 = vector.extract_strided_slice %3 {offsets = [8, 0], sizes = [8, 1], strides = [1, 1]} : vector<88x32xf32> to vector<8x1xf32>
    %6 = vector.extract_strided_slice %3 {offsets = [16, 0], sizes = [2, 8], strides = [1, 1]} : vector<88x32xf32> to vector<2x8xf32>
    %7 = vector.extract_strided_slice %3 {offsets = [24, 0], sizes = [2, 1], strides = [1, 1]} : vector<88x32xf32> to vector<2x1xf32>
    %8 = vector.extract_strided_slice %3 {offsets = [32, 0], sizes = [32, 2], strides = [1, 1]} : vector<88x32xf32> to vector<32x2xf32>
    %9 = vector.extract_strided_slice %3 {offsets = [64, 0], sizes = [1, 2], strides = [1, 1]} : vector<88x32xf32> to vector<1x2xf32>
    %10 = vector.extract_strided_slice %3 {offsets = [72, 0], sizes = [2, 32], strides = [1, 1]} : vector<88x32xf32> to vector<2x32xf32>
    %11 = vector.extract_strided_slice %3 {offsets = [80, 0], sizes = [1, 32], strides = [1, 1]} : vector<88x32xf32> to vector<1x32xf32>
    %12 = vector.shape_cast %0 : vector<1x32x256xf32> to vector<32x256xf32>
    %cst = arith.constant dense<0.000000e+00> : vector<32x32xf32>
    %13 = tpu.matmul %12, %1, %cst {dimension_numbers = #tpu.dot_dimension_numbers<[1], [0], [0], [1], [0, 0, 1, 1], [], []>} : vector<32x256xf32>, vector<256x32xf32>, vector<32x32xf32> -> vector<32x32xf32>
    %14 = vector.shape_cast %13 : vector<32x32xf32> to vector<1x32x32xf32>
    %15 = vector.shape_cast %4 : vector<8x32xf32> to vector<1x8x32xf32>
    "tpu.trace_start"() <{level = 10 : i32, message = "bmc,bcl->bml"}> : () -> ()
    %cst_8 = arith.constant dense<0.000000e+00> : vector<1x8x32xf32>
    %16 = tpu.matmul %15, %14, %cst_8 {dimension_numbers = #tpu.dot_dimension_numbers<[2], [1], [1], [2], [0, 0, 0, 1, 1, 2], [0], [0]>} : vector<1x8x32xf32>, vector<1x32x32xf32>, vector<1x8x32xf32> -> vector<1x8x32xf32>
    "tpu.trace_stop"() : () -> ()
    %17 = vector.shape_cast %5 : vector<8x1xf32> to vector<1x8x1xf32>
    %18 = vector.broadcast %17 : vector<1x8x1xf32> to vector<1x8x32xf32>
    %19 = arith.addf %16, %18 : vector<1x8x32xf32>
    %cst_9 = arith.constant 3.000000e+00 : f32
    %20 = vector.broadcast %cst_9 : f32 to vector<1x8x32xf32>
    %21 = arith.addf %19, %20 : vector<1x8x32xf32>
    %cst_10 = arith.constant 0.000000e+00 : f32
    %cst_11 = arith.constant 6.000000e+00 : f32
    %22 = vector.broadcast %cst_10 : f32 to vector<1x8x32xf32>
    %23 = arith.maximumf %22, %21 : vector<1x8x32xf32>
    %24 = vector.broadcast %cst_11 : f32 to vector<1x8x32xf32>
    %25 = arith.minimumf %24, %23 : vector<1x8x32xf32>
    %cst_12 = arith.constant 0.166666672 : f32
    %26 = vector.broadcast %cst_12 : f32 to vector<1x8x32xf32>
    %27 = arith.mulf %25, %26 : vector<1x8x32xf32>
    %28 = arith.mulf %19, %27 : vector<1x8x32xf32>
    %29 = vector.shape_cast %6 : vector<2x8xf32> to vector<1x2x8xf32>
    "tpu.trace_start"() <{level = 10 : i32, message = "bom,bml->bol"}> : () -> ()
    %cst_13 = arith.constant dense<0.000000e+00> : vector<1x2x32xf32>
    %30 = tpu.matmul %29, %28, %cst_13 {dimension_numbers = #tpu.dot_dimension_numbers<[2], [1], [1], [2], [0, 0, 0, 1, 1, 2], [0], [0]>} : vector<1x2x8xf32>, vector<1x8x32xf32>, vector<1x2x32xf32> -> vector<1x2x32xf32>
    "tpu.trace_stop"() : () -> ()
    %31 = vector.shape_cast %7 : vector<2x1xf32> to vector<1x2x1xf32>
    %32 = vector.broadcast %31 : vector<1x2x1xf32> to vector<1x2x32xf32>
    %33 = arith.addf %30, %32 : vector<1x2x32xf32>
    %34 = vector.extract_strided_slice %33 {offsets = [0, 0, 0], sizes = [1, 1, 16], strides = [1, 1, 1]} : vector<1x2x32xf32> to vector<1x1x16xf32>
    %35 = arith.negf %34 : vector<1x1x16xf32>
    %36 = math.exp %35 : vector<1x1x16xf32>
    %cst_14 = arith.constant 1.000000e+00 : f32
    %37 = vector.broadcast %cst_14 : f32 to vector<1x1x16xf32>
    %38 = arith.addf %37, %36 : vector<1x1x16xf32>
    %39 = arith.divf %37, %38 : vector<1x1x16xf32>
    %40 = vector.shape_cast %39 : vector<1x1x16xf32> to vector<1x16xf32>
    %41 = vector.extract_strided_slice %33 {offsets = [0, 1, 16], sizes = [1, 1, 16], strides = [1, 1, 1]} : vector<1x2x32xf32> to vector<1x1x16xf32>
    %42 = arith.negf %41 : vector<1x1x16xf32>
    %43 = math.exp %42 : vector<1x1x16xf32>
    %cst_15 = arith.constant 1.000000e+00 : f32
    %44 = vector.broadcast %cst_15 : f32 to vector<1x1x16xf32>
    %45 = arith.addf %44, %43 : vector<1x1x16xf32>
    %46 = arith.divf %44, %45 : vector<1x1x16xf32>
    %47 = vector.shape_cast %46 : vector<1x1x16xf32> to vector<1x16xf32>
    %48 = vector.extract_strided_slice %2 {offsets = [0, 0], sizes = [16, 256], strides = [1, 1]} : vector<32x256xf32> to vector<16x256xf32>
    %cst_16 = arith.constant dense<0.000000e+00> : vector<1x256xf32>
    %49 = tpu.matmul %40, %48, %cst_16 {dimension_numbers = #tpu.dot_dimension_numbers<[1], [0], [0], [1], [0, 0, 1, 1], [], []>} : vector<1x16xf32>, vector<16x256xf32>, vector<1x256xf32> -> vector<1x256xf32>
    %50 = vector.extract_strided_slice %2 {offsets = [16, 0], sizes = [16, 256], strides = [1, 1]} : vector<32x256xf32> to vector<16x256xf32>
    %cst_17 = arith.constant dense<0.000000e+00> : vector<1x256xf32>
    %51 = tpu.matmul %47, %50, %cst_17 {dimension_numbers = #tpu.dot_dimension_numbers<[1], [0], [0], [1], [0, 0, 1, 1], [], []>} : vector<1x16xf32>, vector<16x256xf32>, vector<1x256xf32> -> vector<1x256xf32>
    %52 = arith.mulf %49, %51 : vector<1x256xf32>
    %53 = vector.shape_cast %52 : vector<1x256xf32> to vector<1x1x256xf32>
    "tpu.trace_start"() <{level = 10 : i32, message = "bol,bcl->boc"}> : () -> ()
    %cst_18 = arith.constant dense<0.000000e+00> : vector<1x1x32xf32>
    %54 = tpu.matmul %53, %0, %cst_18 {dimension_numbers = #tpu.dot_dimension_numbers<[2], [2], [1], [1], [0, 0, 0, 1, 1, 1], [0], [0]>} : vector<1x1x256xf32>, vector<1x32x256xf32>, vector<1x1x32xf32> -> vector<1x1x32xf32>
    "tpu.trace_stop"() : () -> ()
    %55 = vector.shape_cast %54 : vector<1x1x32xf32> to vector<1x32xf32>
    %cst_19 = arith.constant dense<0.000000e+00> : vector<1x2xf32>
    %56 = tpu.matmul %55, %8, %cst_19 {dimension_numbers = #tpu.dot_dimension_numbers<[1], [0], [0], [1], [0, 0, 1, 1], [], []>} : vector<1x32xf32>, vector<32x2xf32>, vector<1x2xf32> -> vector<1x2xf32>
    %57 = arith.addf %56, %9 : vector<1x2xf32>
    %cst_20 = arith.constant 0.000000e+00 : f32
    %58 = vector.broadcast %cst_20 : f32 to vector<1x2xf32>
    %59 = arith.maximumf %57, %58 : vector<1x2xf32>
    %cst_21 = arith.constant dense<0.000000e+00> : vector<1x32xf32>
    %60 = tpu.matmul %59, %10, %cst_21 {dimension_numbers = #tpu.dot_dimension_numbers<[1], [0], [0], [1], [0, 0, 1, 1], [], []>} : vector<1x2xf32>, vector<2x32xf32>, vector<1x32xf32> -> vector<1x32xf32>
    %61 = arith.addf %60, %11 : vector<1x32xf32>
    %62 = arith.negf %61 : vector<1x32xf32>
    %63 = math.exp %62 : vector<1x32xf32>
    %cst_22 = arith.constant 1.000000e+00 : f32
    %64 = vector.broadcast %cst_22 : f32 to vector<1x32xf32>
    %65 = arith.addf %64, %63 : vector<1x32xf32>
    %66 = arith.divf %64, %65 : vector<1x32xf32>
    %67 = vector.shape_cast %66 : vector<1x32xf32> to vector<1x32x1xf32>
    %68 = vector.broadcast %67 : vector<1x32x1xf32> to vector<1x32x256xf32>
    %69 = arith.mulf %0, %68 : vector<1x32x256xf32>
    %c0_23 = arith.constant 0 : index
    %c0_24 = arith.constant 0 : index
    %c0_25 = arith.constant 0 : index
    %70 = vector.load %arg5[%c0_23, %c0_24, %c0_25] : memref<1x32x256xf32, #tpu.memory_space<vmem>>, vector<1x32x256xf32>
    tpu.vector_store %arg5[%c0_23, %c0_24, %c0_25], %69 {strides = array<i32>} : memref<1x32x256xf32, #tpu.memory_space<vmem>>, vector<1x32x256xf32>,
    return
  }
  func.func @transform_0(%arg0: i32) -> (i32, i32, i32) {
    %c0_i32 = arith.constant 0 : i32
    %c0_i32_0 = arith.constant 0 : i32
    %c0_i32_1 = arith.constant 0 : i32
    return %arg0, %c0_i32, %c0_i32_0 : i32, i32, i32
  }
  func.func @transform_1(%arg0: i32) -> (i32, i32) {
    %c0_i32 = arith.constant 0 : i32
    %c0_i32_0 = arith.constant 0 : i32
    %c0_i32_1 = arith.constant 0 : i32
    return %c0_i32, %c0_i32_0 : i32, i32
  }
  func.func @transform_2(%arg0: i32) -> (i32, i32) {
    %c0_i32 = arith.constant 0 : i32
    %c0_i32_0 = arith.constant 0 : i32
    %c0_i32_1 = arith.constant 0 : i32
    return %c0_i32, %c0_i32_0 : i32, i32
  }
  func.func @transform_3(%arg0: i32) -> (i32, i32) {
    %c0_i32 = arith.constant 0 : i32
    %c0_i32_0 = arith.constant 0 : i32
    %c0_i32_1 = arith.constant 0 : i32
    return %c0_i32, %c0_i32_0 : i32, i32
  }
  func.func @transform_4(%arg0: i32) -> (i32, i32, i32) {
    %c0_i32 = arith.constant 0 : i32
    %c0_i32_0 = arith.constant 0 : i32
    %c0_i32_1 = arith.constant 0 : i32
    return %arg0, %c0_i32, %c0_i32_0 : i32, i32, i32
  }
}

</mosaic_0001>

<llo_original>
// kernel: tpu_custom_call.1
$region0: #{tpu_custom_call.1}
  #allocation0 [shape = 'u32[]', space=smem, size = 0x4, offset = 0x4, fixed_abs, tag = 'smem constant byte address 0x4 - core index']
  #allocation1 [shape = 'u32[144,128]{1,0:T(1,128)}', space=vmem, size = 0x12000, scoped, tag = 'internal scratch']
  %s0 = inlined_call_operand.vmem [shape: f32[2,32,256], index: 0, kind: input, shape index: {}]
  %s1 = inlined_call_operand.vmem [shape: f32[256,32], index: 1, kind: input, shape index: {}]
  %s2 = inlined_call_operand.vmem [shape: f32[32,256], index: 2, kind: input, shape index: {}]
  %s3 = inlined_call_operand.vmem [shape: f32[88,32], index: 3, kind: input, shape index: {}]
  %s4 = inlined_call_operand.hbm [shape: f32[2,32,256], index: 4, kind: output, shape index: {}]
  %s5 = sld [smem:[#allocation0]]
  $region49: #{tpu_custom_call.1} parent=0
    _
  %s7 = ssub.s32 1, %s5
  %s8 = scalar_select 0, %s7, %s5
  $region1: #{tpu_custom_call.1} parent=0
    #allocation2 [shape = 'u8[65536]{0}', space=vmem, size = 0x10000, scoped, tag = 'output window, operand 0']
    #allocation3 [shape = 's32[2]{0}', space=sflag, size = 0x8, scoped, tag = 'scoped memory for tpu_custom_call.1']
    %9 = vsyncpa [#allocation3], 0
    %s10 = scalar_lea.sflag [#allocation3], 1
    %11 = vsyncpa %s10, 0
    loop: start=0, step=1, limit=4
    $region2: #{tpu_custom_call.1} parent=1 // loop_pre_header
      _
    $region3: #{tpu_custom_call.1} parent=1 // loop_header
      %s13 = sphi 0, %s17
      %p14 = scmp.ge.s32.totalorder %s13, 4
      %s23 = sphi 0, %s25
      %s26 = sphi 0, %s23
      %s27 = sphi 0, %s26
      %s43 = sphi 0, %s27
      %s47 = sphi 0, %s47
      %s49 = sphi 0, %s47
      %s50 = sphi 0, %s49
      %s64 = sphi 0, %s50
      %s68 = sphi 0, %s68
      %s70 = sphi 0, %s68
      %s71 = sphi 0, %s70
      %s85 = sphi 0, %s71
      %s89 = sphi 0, %s89
      %s91 = sphi 0, %s89
      %s92 = sphi 0, %s91
      %s106 = sphi 0, %s92
      %s112 = sphi 0, %s114
      %s115 = sphi 0, %s112
      %s116 = sphi 0, %s115
      %s132 = sphi 0, %s116
    $region4: #{tpu_custom_call.1} parent=1 // loop_header_branch
      %16 = sbr.rel (%p14) target = $region8
    $region5: #{tpu_custom_call.1} parent=1 // loop_body
      %s18 = ssub.s32 %s13, 1
      %s19 = ssub.s32 %s13, 2
      %s20 = sadd.s32 %s13, 1
      %s21 = ssub.s32 %s13, %s20
      %p22 = scmp.eq.s32.totalorder %s21, 0
      %s24 = sadd.s32 %s23, 1
      %s25 = scalar_select %p22, %s23, %s24
      %p28 = pneg %p22
      %p29 = scmp.eq.s32.totalorder %s13, 1
      %p30 = por %p28, %p29
      %p31 = scmp.ne.s32.totalorder %s23, %s26
      %p32 = scmp.eq.s32.totalorder %s13, 0
      %p33 = por %p31, %p32
      %p34 = scmp.ne.s32.totalorder %s23, %s26
      %p35 = scmp.eq.s32.totalorder %s18, 1
      %p36 = por %p34, %p35
      %p37 = scmp.ne.s32.totalorder %s26, %s27
      %p38 = scmp.eq.s32.totalorder %s18, 0
      %p39 = por %p37, %p38
      %p40 = scmp.ne.s32.totalorder %s26, %s27
      %p41 = scmp.eq.s32.totalorder %s19, 1
      %p42 = por %p40, %p41
      %p44 = scmp.ne.s32.totalorder %s27, %s43
      %p45 = scmp.eq.s32.totalorder %s19, 0
      %p46 = por %p44, %p45
      %s48 = sadd.s32 %s47, 1
      %p51 = scmp.eq.s32.totalorder %s13, 1
      %p52 = scmp.ne.s32.totalorder %s47, %s49
      %p53 = scmp.eq.s32.totalorder %s13, 0
      %p54 = por %p52, %p53
      %p55 = scmp.ne.s32.totalorder %s47, %s49
      %p56 = scmp.eq.s32.totalorder %s18, 1
      %p57 = por %p55, %p56
      %p58 = scmp.ne.s32.totalorder %s49, %s50
      %p59 = scmp.eq.s32.totalorder %s18, 0
      %p60 = por %p58, %p59
      %p61 = scmp.ne.s32.totalorder %s49, %s50
      %p62 = scmp.eq.s32.totalorder %s19, 1
      %p63 = por %p61, %p62
      %p65 = scmp.ne.s32.totalorder %s50, %s64
      %p66 = scmp.eq.s32.totalorder %s19, 0
      %p67 = por %p65, %p66
      %s69 = sadd.s32 %s68, 1
      %p72 = scmp.eq.s32.totalorder %s13, 1
      %p73 = scmp.ne.s32.totalorder %s68, %s70
      %p74 = scmp.eq.s32.totalorder %s13, 0
      %p75 = por %p73, %p74
      %p76 = scmp.ne.s32.totalorder %s68, %s70
      %p77 = scmp.eq.s32.totalorder %s18, 1
      %p78 = por %p76, %p77
      %p79 = scmp.ne.s32.totalorder %s70, %s71
      %p80 = scmp.eq.s32.totalorder %s18, 0
      %p81 = por %p79, %p80
      %p82 = scmp.ne.s32.totalorder %s70, %s71
      %p83 = scmp.eq.s32.totalorder %s19, 1
      %p84 = por %p82, %p83
      %p86 = scmp.ne.s32.totalorder %s71, %s85
      %p87 = scmp.eq.s32.totalorder %s19, 0
      %p88 = por %p86, %p87
      %s90 = sadd.s32 %s89, 1
      %p93 = scmp.eq.s32.totalorder %s13, 1
      %p94 = scmp.ne.s32.totalorder %s89, %s91
      %p95 = scmp.eq.s32.totalorder %s13, 0
      %p96 = por %p94, %p95
      %p97 = scmp.ne.s32.totalorder %s89, %s91
      %p98 = scmp.eq.s32.totalorder %s18, 1
      %p99 = por %p97, %p98
      %p100 = scmp.ne.s32.totalorder %s91, %s92
      %p101 = scmp.eq.s32.totalorder %s18, 0
      %p102 = por %p100, %p101
      %p103 = scmp.ne.s32.totalorder %s91, %s92
      %p104 = scmp.eq.s32.totalorder %s19, 1
      %p105 = por %p103, %p104
      %p107 = scmp.ne.s32.totalorder %s92, %s106
      %p108 = scmp.eq.s32.totalorder %s19, 0
      %p109 = por %p107, %p108
      %s110 = ssub.s32 %s13, %s20
      %p111 = scmp.eq.s32.totalorder %s110, 0
      %s113 = sadd.s32 %s112, 1
      %s114 = scalar_select %p111, %s112, %s113
      %p117 = pneg %p111
      %p118 = scmp.eq.s32.totalorder %s13, 1
      %p119 = por %p117, %p118
      %p120 = scmp.ne.s32.totalorder %s112, %s115
      %p121 = scmp.eq.s32.totalorder %s13, 0
      %p122 = por %p120, %p121
      %p123 = scmp.ne.s32.totalorder %s112, %s115
      %p124 = scmp.eq.s32.totalorder %s18, 1
      %p125 = por %p123, %p124
      %p126 = scmp.ne.s32.totalorder %s115, %s116
      %p127 = scmp.eq.s32.totalorder %s18, 0
      %p128 = por %p126, %p127
      %p129 = scmp.ne.s32.totalorder %s115, %s116
      %p130 = scmp.eq.s32.totalorder %s19, 1
      %p131 = por %p129, %p130
      %p133 = scmp.ne.s32.totalorder %s116, %s132
      %p134 = scmp.eq.s32.totalorder %s19, 0
      %p135 = por %p133, %p134
      %p136 = scmp.le.s32.totalorder 1, %s13
      %p137 = scmp.lt.s32.totalorder %s13, 3
      %p138 = pnand %p136, %p137
      %p139 = pneg %p138
      // Predicated region
      $region9: #{tpu_custom_call.1} parent=5 // pred_check
        _
      $region10: #{tpu_custom_call.1} parent=5 // pred_check_branch
        %141 = sbr.rel (%p138) target = $region12
      $region11: #{tpu_custom_call.1} parent=5 // pred_region
        %s142 = ssub.s32 %s13, 1
        // Predicated region
        $region13: #{tpu_custom_call.1} parent=11 // pred_check
          %p143 = pneg %p60
        $region14: #{tpu_custom_call.1} parent=11 // pred_check_branch
          %145 = sbr.rel (%p143) target = $region16
        $region15: #{tpu_custom_call.1} parent=11 // pred_region
          _
        $region16: #{tpu_custom_call.1} parent=11 // pred_fallthru
          _
        // Predicated region
        $region17: #{tpu_custom_call.1} parent=11 // pred_check
          %p146 = pneg %p81
        $region18: #{tpu_custom_call.1} parent=11 // pred_check_branch
          %148 = sbr.rel (%p146) target = $region20
        $region19: #{tpu_custom_call.1} parent=11 // pred_region
          _
        $region20: #{tpu_custom_call.1} parent=11 // pred_fallthru
          _
        // Predicated region
        $region21: #{tpu_custom_call.1} parent=11 // pred_check
          %p149 = pneg %p102
        $region22: #{tpu_custom_call.1} parent=11 // pred_check_branch
          %151 = sbr.rel (%p149) target = $region24
        $region23: #{tpu_custom_call.1} parent=11 // pred_region
          _
        $region24: #{tpu_custom_call.1} parent=11 // pred_fallthru
          _
      $region12: #{tpu_custom_call.1} parent=5 // pred_fallthru
        _
      %p152 = scmp.lt.s32.totalorder %s13, 2
      // Predicated region
      $region25: #{tpu_custom_call.1} parent=5 // pred_check
        %p153 = pneg %p152
      $region26: #{tpu_custom_call.1} parent=5 // pred_check_branch
        %155 = sbr.rel (%p153) target = $region28
      $region27: #{tpu_custom_call.1} parent=5 // pred_region
        // Predicated region
        $region29: #{tpu_custom_call.1} parent=27 // pred_check
          %p156 = pneg %p33
        $region30: #{tpu_custom_call.1} parent=27 // pred_check_branch
          %158 = sbr.rel (%p156) target = $region32
        $region31: #{tpu_custom_call.1} parent=27 // pred_region
          %p159 = scmp.lt.s32.totalorder %s13, 1
          %s160 = scalar_select %p159, %s13, 1
          %s161 = smul.addr %s160, 8
          %s162 = smul.addr %s161, 8
          %s163 = scalar_lea.vmem %s0, %s162
        $region32: #{tpu_custom_call.1} parent=27 // pred_fallthru
          _
      $region28: #{tpu_custom_call.1} parent=5 // pred_fallthru
        _
      %p164 = scmp.le.s32.totalorder 1, %s13
      %p165 = scmp.lt.s32.totalorder %s13, 3
      %p166 = pnand %p164, %p165
      %p167 = pneg %p166
      // Predicated region
      $region33: #{tpu_custom_call.1} parent=5 // pred_check
        _
      $region34: #{tpu_custom_call.1} parent=5 // pred_check_branch
        %169 = sbr.rel (%p166) target = $region36
      $region35: #{tpu_custom_call.1} parent=5 // pred_region
        %s170 = ssub.s32 %s13, 1
        %p171 = scmp.lt.s32.totalorder %s18, 1
        %s172 = scalar_select %p171, %s18, 1
        %s173 = smul.addr %s172, 8
        %s174 = smul.addr %s173, 8
        %s175 = scalar_lea.vmem %s0, %s174
        %p176 = pneg %p39
        %p177 = pneg %p36
        %p178 = pneg %p60
        %p179 = pneg %p57
        %p180 = pneg %p81
        %p181 = pneg %p78
        %p182 = pneg %p102
        %p183 = pneg %p99
        %p184 = pneg %p128
        %p185 = pneg %p125
        %s186 = sand.u32 %s115, 1
        %s187 = scalar_lea.sflag [#allocation3], %s186
        %s188 = sand.u32 %s115, 1
        %s189 = smul.addr %s188, 64
        %s190 = scalar_lea.vmem [#allocation2], %s189
        %p191 = scmp.lt.s32.totalorder %s18, 1
        %s192 = scalar_select %p191, %s18, 1
        %s193 = smul.addr %s192, 8
        %s194 = smul.addr %s193, 8
        %s195 = scalar_lea.vmem %s0, %s194
        %v196 = vld [vmem:[%s195] sm:$0xff]
        %v197 = vld [vmem:[%s195 + $0x8] sm:$0xff]
        %v198 = vld [vmem:[%s195 + $0x10] sm:$0xff]
        %v199 = vld [vmem:[%s195 + $0x18] sm:$0xff]
        %v200 = vld [vmem:[%s195 + $0x20] sm:$0xff]
        %v201 = vld [vmem:[%s195 + $0x28] sm:$0xff]
        %v202 = vld [vmem:[%s195 + $0x30] sm:$0xff]
        %v203 = vld [vmem:[%s195 + $0x38] sm:$0xff]
        %v204 = vld [vmem:[%s1] sm:$0xff]
        %v205 = vld [vmem:[%s1 + $0x8] sm:$0xff]
        %v206 = vld [vmem:[%s1 + $0x10] sm:$0xff]
        %v207 = vld [vmem:[%s1 + $0x18] sm:$0xff]
        %v208 = vld [vmem:[%s1 + $0x20] sm:$0xff]
        %v209 = vld [vmem:[%s1 + $0x28] sm:$0xff]
        %v210 = vld [vmem:[%s1 + $0x30] sm:$0xff]
        %v211 = vld [vmem:[%s1 + $0x38] sm:$0xff]
        %v212 = vld [vmem:[%s1 + $0x40] sm:$0xff]
        %v213 = vld [vmem:[%s1 + $0x48] sm:$0xff]
        %v214 = vld [vmem:[%s1 + $0x50] sm:$0xff]
        %v215 = vld [vmem:[%s1 + $0x58] sm:$0xff]
        %v216 = vld [vmem:[%s1 + $0x60] sm:$0xff]
        %v217 = vld [vmem:[%s1 + $0x68] sm:$0xff]
        %v218 = vld [vmem:[%s1 + $0x70] sm:$0xff]
        %v219 = vld [vmem:[%s1 + $0x78] sm:$0xff]
        %v220 = vld [vmem:[%s1 + $0x80] sm:$0xff]
        %v221 = vld [vmem:[%s1 + $0x88] sm:$0xff]
        %v222 = vld [vmem:[%s1 + $0x90] sm:$0xff]
        %v223 = vld [vmem:[%s1 + $0x98] sm:$0xff]
        %v224 = vld [vmem:[%s1 + $0xa0] sm:$0xff]
        %v225 = vld [vmem:[%s1 + $0xa8] sm:$0xff]
        %v226 = vld [vmem:[%s1 + $0xb0] sm:$0xff]
        %v227 = vld [vmem:[%s1 + $0xb8] sm:$0xff]
        %v228 = vld [vmem:[%s1 + $0xc0] sm:$0xff]
        %v229 = vld [vmem:[%s1 + $0xc8] sm:$0xff]
        %v230 = vld [vmem:[%s1 + $0xd0] sm:$0xff]
        %v231 = vld [vmem:[%s1 + $0xd8] sm:$0xff]
        %v232 = vld [vmem:[%s1 + $0xe0] sm:$0xff]
        %v233 = vld [vmem:[%s1 + $0xe8] sm:$0xff]
        %v234 = vld [vmem:[%s1 + $0xf0] sm:$0xff]
        %v235 = vld [vmem:[%s1 + $0xf8] sm:$0xff]
        %v236 = vld [vmem:[%s2] sm:$0xff]
        %v237 = vld [vmem:[%s2 + $0x8] sm:$0xff]
        %v238 = vld [vmem:[%s2 + $0x10] sm:$0xff]
        %v239 = vld [vmem:[%s2 + $0x18] sm:$0xff]
        %v240 = vld [vmem:[%s2 + $0x20] sm:$0xff]
        %v241 = vld [vmem:[%s2 + $0x28] sm:$0xff]
        %v242 = vld [vmem:[%s2 + $0x30] sm:$0xff]
        %v243 = vld [vmem:[%s2 + $0x38] sm:$0xff]
        %v244 = vld [vmem:[%s3] sm:$0xff]
        %v245 = vld [vmem:[%s3 + $0x8] sm:$0xff]
        %v246 = vld [vmem:[%s3 + $0x10] sm:$0xff]
        %v247 = vld [vmem:[%s3 + $0x18] sm:$0xff]
        %v248 = vld [vmem:[%s3 + $0x20] sm:$0xff]
        %v249 = vld [vmem:[%s3 + $0x28] sm:$0xff]
        %v250 = vld [vmem:[%s3 + $0x30] sm:$0xff]
        %v251 = vld [vmem:[%s3 + $0x38] sm:$0xff]
        %v252 = vld [vmem:[%s3 + $0x40] sm:$0xff]
        %v253 = vld [vmem:[%s3 + $0x48] sm:$0xff]
        %v254 = vld [vmem:[%s3 + $0x50] sm:$0xff]
        %255 = vmatprep.subr.mxu0 0.0
        %256 = vmatpush1.msra.mxu0 %v219
        %257 = vmatprep.subr.mxu0 0.0
        %258 = vmatpush1.msra.mxu0 %v218
        %259 = vmatprep.subr.mxu0 0.0
        %260 = vmatpush1.msra.mxu0 %v217
        %261 = vmatprep.subr.mxu0 0.0
        %262 = vmatpush1.msra.mxu0 %v216
        %263 = vmatprep.subr.mxu0 0.0
        %264 = vmatpush1.msra.mxu0 %v215
        %265 = vmatprep.subr.mxu0 0.0
        %266 = vmatpush1.msra.mxu0 %v214
        %267 = vmatprep.subr.mxu0 0.0
        %268 = vmatpush1.msra.mxu0 %v213
        %269 = vmatprep.subr.mxu0 0.0
        %270 = vmatpush1.msra.mxu0 %v212
        %271 = vmatprep.subr.mxu0 0.0
        %272 = vmatpush1.msra.mxu0 %v211
        %273 = vmatprep.subr.mxu0 0.0
        %274 = vmatpush1.msra.mxu0 %v210
        %275 = vmatprep.subr.mxu0 0.0
        %276 = vmatpush1.msra.mxu0 %v209
        %277 = vmatprep.subr.mxu0 0.0
        %278 = vmatpush1.msra.mxu0 %v208
        %279 = vmatprep.subr.mxu0 0.0
        %280 = vmatpush1.msra.mxu0 %v207
        %281 = vmatprep.subr.mxu0 0.0
        %282 = vmatpush1.msra.mxu0 %v206
        %283 = vmatprep.subr.mxu0 0.0
        %284 = vmatpush1.msra.mxu0 %v205
        %285 = vmatprep.subr.mxu0 0.0
        %286 = vmatpush1.msra.mxu0 %v204
        %287 = vmatprep.subr.mxu0 0.0
        %288 = vmatpush2.msra.mxu0 %v235
        %289 = vmatprep.subr.mxu0 0.0
        %290 = vmatpush2.msra.mxu0 %v234
        %291 = vmatprep.subr.mxu0 0.0
        %292 = vmatpush2.msra.mxu0 %v233
        %293 = vmatprep.subr.mxu0 0.0
        %294 = vmatpush2.msra.mxu0 %v232
        %295 = vmatprep.subr.mxu0 0.0
        %296 = vmatpush2.msra.mxu0 %v231
        %297 = vmatprep.subr.mxu0 0.0
        %298 = vmatpush2.msra.mxu0 %v230
        %299 = vmatprep.subr.mxu0 0.0
        %300 = vmatpush2.msra.mxu0 %v229
        %301 = vmatprep.subr.mxu0 0.0
        %302 = vmatpush2.msra.mxu0 %v228
        %303 = vmatprep.subr.mxu0 0.0
        %304 = vmatpush2.msra.mxu0 %v227
        %305 = vmatprep.subr.mxu0 0.0
        %306 = vmatpush2.msra.mxu0 %v226
        %307 = vmatprep.subr.mxu0 0.0
        %308 = vmatpush2.msra.mxu0 %v225
        %309 = vmatprep.subr.mxu0 0.0
        %310 = vmatpush2.msra.mxu0 %v224
        %311 = vmatprep.subr.mxu0 0.0
        %312 = vmatpush2.msra.mxu0 %v223
        %313 = vmatprep.subr.mxu0 0.0
        %314 = vmatpush2.msra.mxu0 %v222
        %315 = vmatprep.subr.mxu0 0.0
        %316 = vmatpush2.msra.mxu0 %v221
        %317 = vmatprep.subr.mxu0 0.0
        %318 = vmatpush2.msra.mxu0 %v220
        %319 = vmatprep.mubr.f32.mxu0 %v197
        %320 = vmatmul.mubr.f32.gmra.mxu0 %v196
        %v321 = vpop.f32.mrf.mxu0
        %v322 = vadd.f32 0.0, %v321
        %v323 = vpop.f32.mrf.mxu0
        %324 = vmatprep.mubr.f32.mxu0 %v199
        %325 = vmatmul.mubr.f32.gmra.mxu0 %v198
        %v326 = vpop.f32.mrf.mxu0
        %v327 = vadd.f32 0.0, %v326
        %v328 = vpop.f32.mrf.mxu0
        %329 = vmatprep.mubr.f32.mxu0 %v201
        %330 = vmatmul.mubr.f32.gmra.mxu0 %v200
        %v331 = vpop.f32.mrf.mxu0
        %v332 = vadd.f32 0.0, %v331
        %v333 = vpop.f32.mrf.mxu0
        %334 = vmatprep.mubr.f32.mxu0 %v203
        %335 = vmatmul.mubr.f32.gmra.mxu0 %v202
        %v336 = vpop.f32.mrf.mxu0
        %v337 = vadd.f32 0.0, %v336
        %v338 = vpop.f32.mrf.mxu0
        %339 = vdwg.mxu0
        %341 = vset.pattern.permute.xlu0 0
        %342 = vperm.xlu0 %341, %v245
        %v343 = vpop.permute.xlu0 %342
        %vm345 = vcmask 261120
        %v347 = vsel %vm345, %v244, 0
        %349 = vmatprep.subr.mxu0 0.0
        %350 = vmatpush1.msra.mxu0 0.0
        %351 = vmatprep.subr.mxu0 0.0
        %352 = vmatpush1.msra.mxu0 0.0
        %353 = vmatprep.subr.mxu0 0.0
        %354 = vmatpush1.msra.mxu0 0.0
        %355 = vmatprep.subr.mxu0 0.0
        %356 = vmatpush1.msra.mxu0 0.0
        %357 = vmatprep.subr.mxu0 0.0
        %358 = vmatpush1.msra.mxu0 0.0
        %359 = vmatprep.subr.mxu0 0.0
        %360 = vmatpush1.msra.mxu0 0.0
        %361 = vmatprep.subr.mxu0 0.0
        %362 = vmatpush1.msra.mxu0 0.0
        %363 = vmatprep.subr.mxu0 0.0
        %364 = vmatpush1.msra.mxu0 0.0
        %365 = vmatprep.subr.mxu0 0.0
        %366 = vmatpush1.msra.mxu0 0.0
        %367 = vmatprep.subr.mxu0 0.0
        %368 = vmatpush1.msra.mxu0 0.0
        %369 = vmatprep.subr.mxu0 0.0
        %370 = vmatpush1.msra.mxu0 0.0
        %371 = vmatprep.subr.mxu0 0.0
        %372 = vmatpush1.msra.mxu0 0.0
        %373 = vmatprep.subr.mxu0 0.0
        %374 = vmatpush1.msra.mxu0 %v337
        %375 = vmatprep.subr.mxu0 0.0
        %376 = vmatpush1.msra.mxu0 %v332
        %377 = vmatprep.subr.mxu0 0.0
        %378 = vmatpush1.msra.mxu0 %v327
        %379 = vmatprep.subr.mxu0 0.0
        %380 = vmatpush1.msra.mxu0 %v322
        %381 = vmatprep.subr.mxu0 0.0
        %382 = vmatpush2.msra.mxu0 0.0
        %383 = vmatprep.subr.mxu0 0.0
        %384 = vmatpush2.msra.mxu0 0.0
        %385 = vmatprep.subr.mxu0 0.0
        %386 = vmatpush2.msra.mxu0 0.0
        %387 = vmatprep.subr.mxu0 0.0
        %388 = vmatpush2.msra.mxu0 0.0
        %389 = vmatprep.subr.mxu0 0.0
        %390 = vmatpush2.msra.mxu0 0.0
        %391 = vmatprep.subr.mxu0 0.0
        %392 = vmatpush2.msra.mxu0 0.0
        %393 = vmatprep.subr.mxu0 0.0
        %394 = vmatpush2.msra.mxu0 0.0
        %395 = vmatprep.subr.mxu0 0.0
        %396 = vmatpush2.msra.mxu0 0.0
        %397 = vmatprep.subr.mxu0 0.0
        %398 = vmatpush2.msra.mxu0 0.0
        %399 = vmatprep.subr.mxu0 0.0
        %400 = vmatpush2.msra.mxu0 0.0
        %401 = vmatprep.subr.mxu0 0.0
        %402 = vmatpush2.msra.mxu0 0.0
        %403 = vmatprep.subr.mxu0 0.0
        %404 = vmatpush2.msra.mxu0 0.0
        %405 = vmatprep.subr.mxu0 0.0
        %406 = vmatpush2.msra.mxu0 0.0
        %407 = vmatprep.subr.mxu0 0.0
        %408 = vmatpush2.msra.mxu0 0.0
        %409 = vmatprep.subr.mxu0 0.0
        %410 = vmatpush2.msra.mxu0 0.0
        %411 = vmatprep.subr.mxu0 0.0
        %412 = vmatpush2.msra.mxu0 0.0
        %413 = vmatprep.mubr.f32.mxu0 0.0
        %414 = vmatmul.mubr.f32.gmra.mxu0 %v347
        %v415 = vpop.f32.mrf.mxu0
        %v416 = vadd.f32 %v343, %v415
        %v417 = vpop.f32.mrf.mxu0
        %418 = vdwg.mxu0
        %v419 = vadd.f32 %v416, 3.0
        %v420 = vmax.f32 %v419, 0.0
        %v421 = vmin.f32 %v420, 6.0
        %v422 = vmul.f32 %v421, 0.16666667
        %v423 = vmul.f32 %v416, %v422
        %425 = vset.pattern.permute.xlu0 0
        %426 = vperm.xlu0 %425, %v247
        %v427 = vpop.permute.xlu0 %426
        %vm429 = vcmask 64512
        %v431 = vsel %vm429, %v246, 0
        %433 = vmatprep.subr.mxu0 0.0
        %434 = vmatpush1.msra.mxu0 0.0
        %435 = vmatprep.subr.mxu0 0.0
        %436 = vmatpush1.msra.mxu0 0.0
        %437 = vmatprep.subr.mxu0 0.0
        %438 = vmatpush1.msra.mxu0 0.0
        %439 = vmatprep.subr.mxu0 0.0
        %440 = vmatpush1.msra.mxu0 0.0
        %441 = vmatprep.subr.mxu0 0.0
        %442 = vmatpush1.msra.mxu0 0.0
        %443 = vmatprep.subr.mxu0 0.0
        %444 = vmatpush1.msra.mxu0 0.0
        %445 = vmatprep.subr.mxu0 0.0
        %446 = vmatpush1.msra.mxu0 0.0
        %447 = vmatprep.subr.mxu0 0.0
        %448 = vmatpush1.msra.mxu0 0.0
        %449 = vmatprep.subr.mxu0 0.0
        %450 = vmatpush1.msra.mxu0 0.0
        %451 = vmatprep.subr.mxu0 0.0
        %452 = vmatpush1.msra.mxu0 0.0
        %453 = vmatprep.subr.mxu0 0.0
        %454 = vmatpush1.msra.mxu0 0.0
        %455 = vmatprep.subr.mxu0 0.0
        %456 = vmatpush1.msra.mxu0 0.0
        %457 = vmatprep.subr.mxu0 0.0
        %458 = vmatpush1.msra.mxu0 0.0
        %459 = vmatprep.subr.mxu0 0.0
        %460 = vmatpush1.msra.mxu0 0.0
        %461 = vmatprep.subr.mxu0 0.0
        %462 = vmatpush1.msra.mxu0 0.0
        %463 = vmatprep.subr.mxu0 0.0
        %464 = vmatpush1.msra.mxu0 %v423
        %465 = vmatprep.subr.mxu0 0.0
        %466 = vmatpush2.msra.mxu0 0.0
        %467 = vmatprep.subr.mxu0 0.0
        %468 = vmatpush2.msra.mxu0 0.0
        %469 = vmatprep.subr.mxu0 0.0
        %470 = vmatpush2.msra.mxu0 0.0
        %471 = vmatprep.subr.mxu0 0.0
        %472 = vmatpush2.msra.mxu0 0.0
        %473 = vmatprep.subr.mxu0 0.0
        %474 = vmatpush2.msra.mxu0 0.0
        %475 = vmatprep.subr.mxu0 0.0
        %476 = vmatpush2.msra.mxu0 0.0
        %477 = vmatprep.subr.mxu0 0.0
        %478 = vmatpush2.msra.mxu0 0.0
        %479 = vmatprep.subr.mxu0 0.0
        %480 = vmatpush2.msra.mxu0 0.0
        %481 = vmatprep.subr.mxu0 0.0
        %482 = vmatpush2.msra.mxu0 0.0
        %483 = vmatprep.subr.mxu0 0.0
        %484 = vmatpush2.msra.mxu0 0.0
        %485 = vmatprep.subr.mxu0 0.0
        %486 = vmatpush2.msra.mxu0 0.0
        %487 = vmatprep.subr.mxu0 0.0
        %488 = vmatpush2.msra.mxu0 0.0
        %489 = vmatprep.subr.mxu0 0.0
        %490 = vmatpush2.msra.mxu0 0.0
        %491 = vmatprep.subr.mxu0 0.0
        %492 = vmatpush2.msra.mxu0 0.0
        %493 = vmatprep.subr.mxu0 0.0
        %494 = vmatpush2.msra.mxu0 0.0
        %495 = vmatprep.subr.mxu0 0.0
        %496 = vmatpush2.msra.mxu0 0.0
        %497 = vmatprep.mubr.f32.mxu0 0.0
        %498 = vmatmul.mubr.f32.gmra.mxu0 %v431
        %v499 = vpop.f32.mrf.mxu0
        %v500 = vadd.f32 %v427, %v499
        %v501 = vpop.f32.mrf.mxu0
        %502 = vdwg.mxu0
        %v503 = vxor.u32 %v500, 2147483648
        %v504 = vmul.f32 %v503, 1.442695
        %v505 = vpow.pop %v504
        %v506 = vadd.f32 %v505, 1.0
        %v507 = vrcp.pop %v506
        %v508 = vmul.f32 1.0, %v507
        %vm509 = vcmask 130048
        %v511 = vsel %vm509, %v508, 0
        %513 = vmatprep.subr.mxu0 0.0
        %514 = vmatpush1.msra.mxu0 0.0
        %515 = vmatprep.subr.mxu0 0.0
        %516 = vmatpush1.msra.mxu0 0.0
        %517 = vmatprep.subr.mxu0 0.0
        %518 = vmatpush1.msra.mxu0 0.0
        %519 = vmatprep.subr.mxu0 0.0
        %520 = vmatpush1.msra.mxu0 0.0
        %521 = vmatprep.subr.mxu0 0.0
        %522 = vmatpush1.msra.mxu0 0.0
        %523 = vmatprep.subr.mxu0 0.0
        %524 = vmatpush1.msra.mxu0 0.0
        %525 = vmatprep.subr.mxu0 0.0
        %526 = vmatpush1.msra.mxu0 0.0
        %527 = vmatprep.subr.mxu0 0.0
        %528 = vmatpush1.msra.mxu0 0.0
        %529 = vmatprep.subr.mxu0 0.0
        %530 = vmatpush1.msra.mxu0 0.0
        %531 = vmatprep.subr.mxu0 0.0
        %532 = vmatpush1.msra.mxu0 0.0
        %533 = vmatprep.subr.mxu0 0.0
        %534 = vmatpush1.msra.mxu0 0.0
        %535 = vmatprep.subr.mxu0 0.0
        %536 = vmatpush1.msra.mxu0 0.0
        %537 = vmatprep.subr.mxu0 0.0
        %538 = vmatpush1.msra.mxu0 0.0
        %539 = vmatprep.subr.mxu0 0.0
        %540 = vmatpush1.msra.mxu0 0.0
        %541 = vmatprep.subr.mxu0 %v239
        %542 = vmatpush1.msra.mxu0 %v238
        %543 = vmatprep.subr.mxu0 %v237
        %544 = vmatpush1.msra.mxu0 %v236
        %545 = vmatprep.subr.mxu0 0.0
        %546 = vmatpush2.msra.mxu0 0.0
        %547 = vmatprep.subr.mxu0 0.0
        %548 = vmatpush2.msra.mxu0 0.0
        %549 = vmatprep.subr.mxu0 0.0
        %550 = vmatpush2.msra.mxu0 0.0
        %551 = vmatprep.subr.mxu0 0.0
        %552 = vmatpush2.msra.mxu0 0.0
        %553 = vmatprep.subr.mxu0 0.0
        %554 = vmatpush2.msra.mxu0 0.0
        %555 = vmatprep.subr.mxu0 0.0
        %556 = vmatpush2.msra.mxu0 0.0
        %557 = vmatprep.subr.mxu0 0.0
        %558 = vmatpush2.msra.mxu0 0.0
        %559 = vmatprep.subr.mxu0 0.0
        %560 = vmatpush2.msra.mxu0 0.0
        %561 = vmatprep.subr.mxu0 0.0
        %562 = vmatpush2.msra.mxu0 0.0
        %563 = vmatprep.subr.mxu0 0.0
        %564 = vmatpush2.msra.mxu0 0.0
        %565 = vmatprep.subr.mxu0 0.0
        %566 = vmatpush2.msra.mxu0 0.0
        %567 = vmatprep.subr.mxu0 0.0
        %568 = vmatpush2.msra.mxu0 0.0
        %569 = vmatprep.subr.mxu0 0.0
        %570 = vmatpush2.msra.mxu0 0.0
        %571 = vmatprep.subr.mxu0 0.0
        %572 = vmatpush2.msra.mxu0 0.0
        %573 = vmatprep.subr.mxu0 0.0
        %574 = vmatpush2.msra.mxu0 0.0
        %575 = vmatprep.subr.mxu0 0.0
        %576 = vmatpush2.msra.mxu0 0.0
        %577 = vmatprep.mubr.f32.mxu0 0.0
        %578 = vmatmul.mubr.f32.gmra.mxu0 %v511
        %v579 = vpop.f32.mrf.mxu0
        %v580 = vadd.f32 0.0, %v579
        %v581 = vpop.f32.mrf.mxu0
        %v582 = vadd.f32 0.0, %v581
        %583 = vdwg.mxu0
        %v584 = vrot.slane %v508, 1
        %585 = vrot.lane.b32.xlu0 %v584, 112
        %v586 = vpop.permute.xlu0 %585
        %v587 = vsel %vm509, %v586, 0
        %589 = vmatprep.subr.mxu0 0.0
        %590 = vmatpush1.msra.mxu0 0.0
        %591 = vmatprep.subr.mxu0 0.0
        %592 = vmatpush1.msra.mxu0 0.0
        %593 = vmatprep.subr.mxu0 0.0
        %594 = vmatpush1.msra.mxu0 0.0
        %595 = vmatprep.subr.mxu0 0.0
        %596 = vmatpush1.msra.mxu0 0.0
        %597 = vmatprep.subr.mxu0 0.0
        %598 = vmatpush1.msra.mxu0 0.0
        %599 = vmatprep.subr.mxu0 0.0
        %600 = vmatpush1.msra.mxu0 0.0
        %601 = vmatprep.subr.mxu0 0.0
        %602 = vmatpush1.msra.mxu0 0.0
        %603 = vmatprep.subr.mxu0 0.0
        %604 = vmatpush1.msra.mxu0 0.0
        %605 = vmatprep.subr.mxu0 0.0
        %606 = vmatpush1.msra.mxu0 0.0
        %607 = vmatprep.subr.mxu0 0.0
        %608 = vmatpush1.msra.mxu0 0.0
        %609 = vmatprep.subr.mxu0 0.0
        %610 = vmatpush1.msra.mxu0 0.0
        %611 = vmatprep.subr.mxu0 0.0
        %612 = vmatpush1.msra.mxu0 0.0
        %613 = vmatprep.subr.mxu0 0.0
        %614 = vmatpush1.msra.mxu0 0.0
        %615 = vmatprep.subr.mxu0 0.0
        %616 = vmatpush1.msra.mxu0 0.0
        %617 = vmatprep.subr.mxu0 %v243
        %618 = vmatpush1.msra.mxu0 %v242
        %619 = vmatprep.subr.mxu0 %v241
        %620 = vmatpush1.msra.mxu0 %v240
        %621 = vmatprep.subr.mxu0 0.0
        %622 = vmatpush2.msra.mxu0 0.0
        %623 = vmatprep.subr.mxu0 0.0
        %624 = vmatpush2.msra.mxu0 0.0
        %625 = vmatprep.subr.mxu0 0.0
        %626 = vmatpush2.msra.mxu0 0.0
        %627 = vmatprep.subr.mxu0 0.0
        %628 = vmatpush2.msra.mxu0 0.0
        %629 = vmatprep.subr.mxu0 0.0
        %630 = vmatpush2.msra.mxu0 0.0
        %631 = vmatprep.subr.mxu0 0.0
        %632 = vmatpush2.msra.mxu0 0.0
        %633 = vmatprep.subr.mxu0 0.0
        %634 = vmatpush2.msra.mxu0 0.0
        %635 = vmatprep.subr.mxu0 0.0
        %636 = vmatpush2.msra.mxu0 0.0
        %637 = vmatprep.subr.mxu0 0.0
        %638 = vmatpush2.msra.mxu0 0.0
        %639 = vmatprep.subr.mxu0 0.0
        %640 = vmatpush2.msra.mxu0 0.0
        %641 = vmatprep.subr.mxu0 0.0
        %642 = vmatpush2.msra.mxu0 0.0
        %643 = vmatprep.subr.mxu0 0.0
        %644 = vmatpush2.msra.mxu0 0.0
        %645 = vmatprep.subr.mxu0 0.0
        %646 = vmatpush2.msra.mxu0 0.0
        %647 = vmatprep.subr.mxu0 0.0
        %648 = vmatpush2.msra.mxu0 0.0
        %649 = vmatprep.subr.mxu0 0.0
        %650 = vmatpush2.msra.mxu0 0.0
        %651 = vmatprep.subr.mxu0 0.0
        %652 = vmatpush2.msra.mxu0 0.0
        %653 = vmatprep.mubr.f32.mxu0 0.0
        %654 = vmatmul.mubr.f32.gmra.mxu0 %v587
        %v655 = vpop.f32.mrf.mxu0
        %v656 = vadd.f32 0.0, %v655
        %v657 = vpop.f32.mrf.mxu0
        %v658 = vadd.f32 0.0, %v657
        %659 = vdwg.mxu0
        %v660 = vmul.f32 %v580, %v656
        %v661 = vmul.f32 %v582, %v658
        %662 = vmatprep.subr.mxu0 0.0
        %663 = vmatpush1.xpose.msra.mxu0 0.0
        %664 = vmatprep.subr.mxu0 0.0
        %665 = vmatpush1.xpose.msra.mxu0 0.0
        %666 = vmatprep.subr.mxu0 0.0
        %667 = vmatpush1.xpose.msra.mxu0 0.0
        %668 = vmatprep.subr.mxu0 0.0
        %669 = vmatpush1.xpose.msra.mxu0 0.0
        %670 = vmatprep.subr.mxu0 0.0
        %671 = vmatpush1.xpose.msra.mxu0 0.0
        %672 = vmatprep.subr.mxu0 0.0
        %673 = vmatpush1.xpose.msra.mxu0 0.0
        %674 = vmatprep.subr.mxu0 0.0
        %675 = vmatpush1.xpose.msra.mxu0 0.0
        %676 = vmatprep.subr.mxu0 0.0
        %677 = vmatpush1.xpose.msra.mxu0 0.0
        %678 = vmatprep.subr.mxu0 0.0
        %679 = vmatpush1.xpose.msra.mxu0 0.0
        %680 = vmatprep.subr.mxu0 0.0
        %681 = vmatpush1.xpose.msra.mxu0 0.0
        %682 = vmatprep.subr.mxu0 0.0
        %683 = vmatpush1.xpose.msra.mxu0 0.0
        %684 = vmatprep.subr.mxu0 0.0
        %685 = vmatpush1.xpose.msra.mxu0 0.0
        %686 = vmatprep.subr.mxu0 %v203
        %687 = vmatpush1.xpose.msra.mxu0 %v202
        %688 = vmatprep.subr.mxu0 %v201
        %689 = vmatpush1.xpose.msra.mxu0 %v200
        %690 = vmatprep.subr.mxu0 %v199
        %691 = vmatpush1.xpose.msra.mxu0 %v198
        %692 = vmatprep.subr.mxu0 %v197
        %693 = vmatpush1.xpose.msra.mxu0 %v196
        %694 = vmatprep.subr.mxu0 0.0
        %695 = vmatpush2.xpose.msra.mxu0 0.0
        %696 = vmatprep.subr.mxu0 0.0
        %697 = vmatpush2.xpose.msra.mxu0 0.0
        %698 = vmatprep.subr.mxu0 0.0
        %699 = vmatpush2.xpose.msra.mxu0 0.0
        %700 = vmatprep.subr.mxu0 0.0
        %701 = vmatpush2.xpose.msra.mxu0 0.0
        %702 = vmatprep.subr.mxu0 0.0
        %703 = vmatpush2.xpose.msra.mxu0 0.0
        %704 = vmatprep.subr.mxu0 0.0
        %705 = vmatpush2.xpose.msra.mxu0 0.0
        %706 = vmatprep.subr.mxu0 0.0
        %707 = vmatpush2.xpose.msra.mxu0 0.0
        %708 = vmatprep.subr.mxu0 0.0
        %709 = vmatpush2.xpose.msra.mxu0 0.0
        %710 = vmatprep.subr.mxu0 0.0
        %711 = vmatpush2.xpose.msra.mxu0 0.0
        %712 = vmatprep.subr.mxu0 0.0
        %713 = vmatpush2.xpose.msra.mxu0 0.0
        %714 = vmatprep.subr.mxu0 0.0
        %715 = vmatpush2.xpose.msra.mxu0 0.0
        %716 = vmatprep.subr.mxu0 0.0
        %717 = vmatpush2.xpose.msra.mxu0 0.0
        %718 = vmatprep.subr.mxu0 0.0
        %719 = vmatpush2.xpose.msra.mxu0 0.0
        %720 = vmatprep.subr.mxu0 0.0
        %721 = vmatpush2.xpose.msra.mxu0 0.0
        %722 = vmatprep.subr.mxu0 0.0
        %723 = vmatpush2.xpose.msra.mxu0 0.0
        %724 = vmatprep.subr.mxu0 0.0
        %725 = vmatpush2.xpose.msra.mxu0 0.0
        %726 = vmatprep.mubr.f32.mxu0 %v661
        %727 = vmatmul.mubr.f32.gmra.mxu0 %v660
        %v728 = vpop.f32.mrf.mxu0
        %v729 = vadd.f32 0.0, %v728
        %v730 = vpop.f32.mrf.mxu0
        %731 = vdwg.mxu0
        %v733 = vsel %vm345, %v729, 0
        %735 = vmatprep.subr.mxu0 0.0
        %736 = vmatpush1.msra.mxu0 0.0
        %737 = vmatprep.subr.mxu0 0.0
        %738 = vmatpush1.msra.mxu0 0.0
        %739 = vmatprep.subr.mxu0 0.0
        %740 = vmatpush1.msra.mxu0 0.0
        %741 = vmatprep.subr.mxu0 0.0
        %742 = vmatpush1.msra.mxu0 0.0
        %743 = vmatprep.subr.mxu0 0.0
        %744 = vmatpush1.msra.mxu0 0.0
        %745 = vmatprep.subr.mxu0 0.0
        %746 = vmatpush1.msra.mxu0 0.0
        %747 = vmatprep.subr.mxu0 0.0
        %748 = vmatpush1.msra.mxu0 0.0
        %749 = vmatprep.subr.mxu0 0.0
        %750 = vmatpush1.msra.mxu0 0.0
        %751 = vmatprep.subr.mxu0 0.0
        %752 = vmatpush1.msra.mxu0 0.0
        %753 = vmatprep.subr.mxu0 0.0
        %754 = vmatpush1.msra.mxu0 0.0
        %755 = vmatprep.subr.mxu0 0.0
        %756 = vmatpush1.msra.mxu0 0.0
        %757 = vmatprep.subr.mxu0 0.0
        %758 = vmatpush1.msra.mxu0 0.0
        %759 = vmatprep.subr.mxu0 0.0
        %760 = vmatpush1.msra.mxu0 %v251
        %761 = vmatprep.subr.mxu0 0.0
        %762 = vmatpush1.msra.mxu0 %v250
        %763 = vmatprep.subr.mxu0 0.0
        %764 = vmatpush1.msra.mxu0 %v249
        %765 = vmatprep.subr.mxu0 0.0
        %766 = vmatpush1.msra.mxu0 %v248
        %767 = vmatprep.subr.mxu0 0.0
        %768 = vmatpush2.msra.mxu0 0.0
        %769 = vmatprep.subr.mxu0 0.0
        %770 = vmatpush2.msra.mxu0 0.0
        %771 = vmatprep.subr.mxu0 0.0
        %772 = vmatpush2.msra.mxu0 0.0
        %773 = vmatprep.subr.mxu0 0.0
        %774 = vmatpush2.msra.mxu0 0.0
        %775 = vmatprep.subr.mxu0 0.0
        %776 = vmatpush2.msra.mxu0 0.0
        %777 = vmatprep.subr.mxu0 0.0
        %778 = vmatpush2.msra.mxu0 0.0
        %779 = vmatprep.subr.mxu0 0.0
        %780 = vmatpush2.msra.mxu0 0.0
        %781 = vmatprep.subr.mxu0 0.0
        %782 = vmatpush2.msra.mxu0 0.0
        %783 = vmatprep.subr.mxu0 0.0
        %784 = vmatpush2.msra.mxu0 0.0
        %785 = vmatprep.subr.mxu0 0.0
        %786 = vmatpush2.msra.mxu0 0.0
        %787 = vmatprep.subr.mxu0 0.0
        %788 = vmatpush2.msra.mxu0 0.0
        %789 = vmatprep.subr.mxu0 0.0
        %790 = vmatpush2.msra.mxu0 0.0
        %791 = vmatprep.subr.mxu0 0.0
        %792 = vmatpush2.msra.mxu0 0.0
        %793 = vmatprep.subr.mxu0 0.0
        %794 = vmatpush2.msra.mxu0 0.0
        %795 = vmatprep.subr.mxu0 0.0
        %796 = vmatpush2.msra.mxu0 0.0
        %797 = vmatprep.subr.mxu0 0.0
        %798 = vmatpush2.msra.mxu0 0.0
        %799 = vmatprep.mubr.f32.mxu0 0.0
        %800 = vmatmul.mubr.f32.gmra.mxu0 %v733
        %v801 = vpop.f32.mrf.mxu0
        %v802 = vadd.f32 %v252, %v801
        %v803 = vpop.f32.mrf.mxu0
        %804 = vdwg.mxu0
        %v805 = vmax.f32 %v802, 0.0
        %vm806 = vcmask 15360
        %v808 = vsel %vm806, %v805, 0
        %vm810 = vcmask 1041408
        %v812 = vsel %vm810, %v253, 0
        %814 = vmatprep.subr.mxu0 0.0
        %815 = vmatpush1.msra.mxu0 0.0
        %816 = vmatprep.subr.mxu0 0.0
        %817 = vmatpush1.msra.mxu0 0.0
        %818 = vmatprep.subr.mxu0 0.0
        %819 = vmatpush1.msra.mxu0 0.0
        %820 = vmatprep.subr.mxu0 0.0
        %821 = vmatpush1.msra.mxu0 0.0
        %822 = vmatprep.subr.mxu0 0.0
        %823 = vmatpush1.msra.mxu0 0.0
        %824 = vmatprep.subr.mxu0 0.0
        %825 = vmatpush1.msra.mxu0 0.0
        %826 = vmatprep.subr.mxu0 0.0
        %827 = vmatpush1.msra.mxu0 0.0
        %828 = vmatprep.subr.mxu0 0.0
        %829 = vmatpush1.msra.mxu0 0.0
        %830 = vmatprep.subr.mxu0 0.0
        %831 = vmatpush1.msra.mxu0 0.0
        %832 = vmatprep.subr.mxu0 0.0
        %833 = vmatpush1.msra.mxu0 0.0
        %834 = vmatprep.subr.mxu0 0.0
        %835 = vmatpush1.msra.mxu0 0.0
        %836 = vmatprep.subr.mxu0 0.0
        %837 = vmatpush1.msra.mxu0 0.0
        %838 = vmatprep.subr.mxu0 0.0
        %839 = vmatpush1.msra.mxu0 0.0
        %840 = vmatprep.subr.mxu0 0.0
        %841 = vmatpush1.msra.mxu0 0.0
        %842 = vmatprep.subr.mxu0 0.0
        %843 = vmatpush1.msra.mxu0 0.0
        %844 = vmatprep.subr.mxu0 0.0
        %845 = vmatpush1.msra.mxu0 %v812
        %846 = vmatprep.subr.mxu0 0.0
        %847 = vmatpush2.msra.mxu0 0.0
        %848 = vmatprep.subr.mxu0 0.0
        %849 = vmatpush2.msra.mxu0 0.0
        %850 = vmatprep.subr.mxu0 0.0
        %851 = vmatpush2.msra.mxu0 0.0
        %852 = vmatprep.subr.mxu0 0.0
        %853 = vmatpush2.msra.mxu0 0.0
        %854 = vmatprep.subr.mxu0 0.0
        %855 = vmatpush2.msra.mxu0 0.0
        %856 = vmatprep.subr.mxu0 0.0
        %857 = vmatpush2.msra.mxu0 0.0
        %858 = vmatprep.subr.mxu0 0.0
        %859 = vmatpush2.msra.mxu0 0.0
        %860 = vmatprep.subr.mxu0 0.0
        %861 = vmatpush2.msra.mxu0 0.0
        %862 = vmatprep.subr.mxu0 0.0
        %863 = vmatpush2.msra.mxu0 0.0
        %864 = vmatprep.subr.mxu0 0.0
        %865 = vmatpush2.msra.mxu0 0.0
        %866 = vmatprep.subr.mxu0 0.0
        %867 = vmatpush2.msra.mxu0 0.0
        %868 = vmatprep.subr.mxu0 0.0
        %869 = vmatpush2.msra.mxu0 0.0
        %870 = vmatprep.subr.mxu0 0.0
        %871 = vmatpush2.msra.mxu0 0.0
        %872 = vmatprep.subr.mxu0 0.0
        %873 = vmatpush2.msra.mxu0 0.0
        %874 = vmatprep.subr.mxu0 0.0
        %875 = vmatpush2.msra.mxu0 0.0
        %876 = vmatprep.subr.mxu0 0.0
        %877 = vmatpush2.msra.mxu0 0.0
        %878 = vmatprep.mubr.f32.mxu0 0.0
        %879 = vmatmul.mubr.f32.gmra.mxu0 %v808
        %v880 = vpop.f32.mrf.mxu0
        %v881 = vadd.f32 %v254, %v880
        %v882 = vpop.f32.mrf.mxu0
        %883 = vdwg.mxu0
        %v884 = vxor.u32 %v881, 2147483648
        %v885 = vmul.f32 %v884, 1.442695
        %v886 = vpow.pop %v885
        %v887 = vadd.f32 %v886, 1.0
        %v888 = vrcp.pop %v887
        %v889 = vmul.f32 1.0, %v888
        %v890 = vlaneseq
        %v891 = vshrl.u32 %v890, 7
        %v892 = vsub.s32 0, %v891
        %v893 = vrot.slane %v889, %v892
        %895 = vbcast.lane.b32.xlu0 %v893, 256
        %v896 = vpop.permute.xlu0 %895
        %s898 = sor.u32 256, 8
        %899 = vbcast.lane.b32.xlu0 %v893, %s898
        %v900 = vpop.permute.xlu0 %899
        %s902 = sor.u32 256, 16
        %903 = vbcast.lane.b32.xlu0 %v893, %s902
        %v904 = vpop.permute.xlu0 %903
        %s906 = sor.u32 256, 24
        %907 = vbcast.lane.b32.xlu0 %v893, %s906
        %v908 = vpop.permute.xlu0 %907
        %v909 = vmul.f32 %v196, %v896
        %v910 = vmul.f32 %v197, %v896
        %v911 = vmul.f32 %v198, %v900
        %v912 = vmul.f32 %v199, %v900
        %v913 = vmul.f32 %v200, %v904
        %v914 = vmul.f32 %v201, %v904
        %v915 = vmul.f32 %v202, %v908
        %v916 = vmul.f32 %v203, %v908
        %917 = vst [vmem:[%s190] sm:$0xff] %v909
        %918 = vst [vmem:[%s190 + $0x8] sm:$0xff] %v910
        %919 = vst [vmem:[%s190 + $0x10] sm:$0xff] %v911
        %920 = vst [vmem:[%s190 + $0x18] sm:$0xff] %v912
        %921 = vst [vmem:[%s190 + $0x20] sm:$0xff] %v913
        %922 = vst [vmem:[%s190 + $0x28] sm:$0xff] %v914
        %923 = vst [vmem:[%s190 + $0x30] sm:$0xff] %v915
        %924 = vst [vmem:[%s190 + $0x38] sm:$0xff] %v916
        %s925 = sand.u32 %s115, 1
        %s926 = scalar_lea.sflag [#allocation3], %s925
        %s927 = sand.u32 %s115, 1
        %s928 = smul.addr %s927, 64
        %s929 = scalar_lea.vmem [#allocation2], %s928
        // Predicated region
        $region37: #{tpu_custom_call.1} parent=35 // pred_check
          %p930 = pneg %p125
        $region38: #{tpu_custom_call.1} parent=35 // pred_check_branch
          %932 = sbr.rel (%p930) target = $region40
        $region39: #{tpu_custom_call.1} parent=35 // pred_region
          %s934 = ssub.s32 1024, 1024
          %935 = vsyncadd %s926, %s934
          %s936 = smul.addr %s18, 8
          %s937 = smul.addr %s936, 128
          %s938 = scalar_lea.hbm %s4, %s937
          %s939 = sshll.u32 %s929, 4
          %s940 = int_to_ptr.vmem [resolvable:$true] %s939
          %945 = dma.vmem_to_hbm [thread:$0]  %s940, 1024, %s938, %s926, 256, 256, 16
        $region40: #{tpu_custom_call.1} parent=35 // pred_fallthru
          _
      $region36: #{tpu_custom_call.1} parent=5 // pred_fallthru
        _
      %p946 = scmp.le.s32.totalorder 2, %s13
      // Predicated region
      $region41: #{tpu_custom_call.1} parent=5 // pred_check
        %p947 = pneg %p946
      $region42: #{tpu_custom_call.1} parent=5 // pred_check_branch
        %949 = sbr.rel (%p947) target = $region44
      $region43: #{tpu_custom_call.1} parent=5 // pred_region
        %s950 = ssub.s32 %s13, 2
        // Predicated region
        $region45: #{tpu_custom_call.1} parent=43 // pred_check
          %p951 = pneg %p131
        $region46: #{tpu_custom_call.1} parent=43 // pred_check_branch
          %953 = sbr.rel (%p951) target = $region48
        $region47: #{tpu_custom_call.1} parent=43 // pred_region
          %s954 = sand.u32 %s116, 1
          %s955 = scalar_lea.sflag [#allocation3], %s954
          %s956 = sand.u32 %s116, 1
          %s957 = smul.addr %s956, 64
          %s958 = scalar_lea.vmem [#allocation2], %s957
          %959 = dma.done %s955, 1024
        $region48: #{tpu_custom_call.1} parent=43 // pred_fallthru
          _
      $region44: #{tpu_custom_call.1} parent=5 // pred_fallthru
        _
    $region6: #{tpu_custom_call.1} parent=1 // loop_footer
      %s17 = sadd.s32 1, %s13
    $region7: #{tpu_custom_call.1} parent=1 // loop_footer_branch
      %12 = sbr.rel target = $region3
    $region8: #{tpu_custom_call.1} parent=1 // loop_exit
      _
    %960 = vsyncpa [#allocation3], 1
    %s961 = scalar_lea.sflag [#allocation3], 1
    %962 = vsyncpa %s961, 1

</llo_original>
